<compile_context>
chip_gen: v7x
topology: tpu7x:2x2x1
jax: 0.10.0
libtpu: 0.0.40
codegen_flags: <defaults>
</compile_context>

<pallas_src>
import functools

import jax
import jax.numpy as jnp
from jax.experimental import pallas as pl
from jax.experimental.pallas import tpu as pltpu

D_IN = 13          # LSTM input size (fixed by the module)
D_IN_PAD = 16      # D_IN rounded up to a sublane multiple
HIDDEN = 32        # hidden_size
T = 8              # sequence length
B = 2              # batch


def lstm_kernel(xf_ref, slab_ref, out_ref, *, seq_len, batch, hidden, d_in_pad):
    """xf_ref:   (T*B, D_IN_PAD) f32, flattened (t, b) rows, zero-padded features
       slab_ref: (rows, 4H) f32 fused parameter slab, gate order i|f|g|o on lanes:
                   rows [0, d_in_pad)             : Wx  (g cols pre-scaled x2)
                   rows [d_in_pad, d_in_pad+H)    : Whh (g cols pre-scaled x2)
                   row  d_in_pad+H                : b_ih + b_hh (g lanes x2)
                   row  d_in_pad+H+1, lanes [0,H) : Linear weight row
                   row  d_in_pad+H+2, lane 0      : Linear bias
       out_ref:  (T*B, 1) f32
    """
    H = hidden
    r_wh = d_in_pad
    r_b = d_in_pad + H

    wx = slab_ref[0:d_in_pad, :]                    # (d_in_pad, 4H)
    wh = slab_ref[r_wh:r_wh + H, :]                 # (H, 4H)
    bias = slab_ref[r_b:r_b + 1, :]                 # (1, 4H)
    wlin = slab_ref[r_b + 1:r_b + 2, 0:H]           # (1, H)
    blin = slab_ref[r_b + 2:r_b + 3, 0:1]           # (1, 1)

    # Hoisted input projection for every timestep at once: (T*B, 4H).
    xproj = jnp.dot(xf_ref[...], wx, preferred_element_type=jnp.float32) + bias

    h = jnp.zeros((batch, H), jnp.float32)
    c = jnp.zeros((batch, H), jnp.float32)
    hs = []

    # Fully unrolled recurrence; only h @ Whh + one sigmoid + one tanh(c) sit
    # on the serial chain. Whh is loop-invariant (stays staged in the MXU).
    for t in range(seq_len):
        pre = xproj[t * batch:(t + 1) * batch, :] + jnp.dot(
            h, wh, preferred_element_type=jnp.float32)          # (B, 4H)
        sig = jax.nn.sigmoid(pre)        # single EUP pass over all four gates
        i_g = sig[:, 0 * H:1 * H]
        f_g = sig[:, 1 * H:2 * H]
        g_g = 2.0 * sig[:, 2 * H:3 * H] - 1.0   # tanh(x) = 2*sigmoid(2x) - 1
        o_g = sig[:, 3 * H:4 * H]
        c = f_g * c + i_g * g_g
        h = o_g * jnp.tanh(c)
        hs.append(h)                     # stays in vregs; no per-step store

    # Epilogue: ReLU + Linear(H, 1) on VPU/XLU (broadcast-mul + lane reduce).
    h_all = jnp.concatenate(hs, axis=0)                         # (T*B, H)
    y = jnp.sum(jnp.maximum(h_all, 0.0) * wlin, axis=-1, keepdims=True) + blin
    out_ref[...] = y.astype(out_ref.dtype)


def my_lstm_forward(x, slab):
    """x: (T, B, D_IN) f32, slab: packed params -> (T, B, 1) f32."""
    t, b, d_in = x.shape
    hidden = slab.shape[1] // 4
    xf = jnp.pad(x.reshape(t * b, d_in), ((0, 0), (0, D_IN_PAD - d_in)))
    vmem = pl.BlockSpec(memory_space=pltpu.MemorySpace.VMEM)
    kernel = functools.partial(lstm_kernel, seq_len=t, batch=b, hidden=hidden,
                               d_in_pad=D_IN_PAD)
    out = pl.pallas_call(
        kernel,
        out_shape=jax.ShapeDtypeStruct((t * b, 1), jnp.float32),
        in_specs=[vmem, vmem],
        out_specs=vmem,
    )(xf, slab)
    return out.reshape(t, b, 1)


def init_params(key, hidden=HIDDEN, d_in=D_IN):
    """PyTorch-layout synthetic parameters (uniform(-1/sqrt(H), 1/sqrt(H)))."""
    ks = jax.random.split(key, 6)
    bound = 1.0 / (hidden ** 0.5)
    u = lambda k, shape: jax.random.uniform(k, shape, jnp.float32, -bound, bound)
    return {
        "w_ih": u(ks[0], (4 * hidden, d_in)),    # weight_ih_l0, gate rows i|f|g|o
        "w_hh": u(ks[1], (4 * hidden, hidden)),  # weight_hh_l0
        "b_ih": u(ks[2], (4 * hidden,)),
        "b_hh": u(ks[3], (4 * hidden,)),
        "w_lin": u(ks[4], (1, hidden)),          # Linear.weight
        "b_lin": u(ks[5], (1,)),                 # Linear.bias
    }


def pack_params(params, d_in=D_IN, d_in_pad=D_IN_PAD):
    """Fuse all parameters into one lane-dense (rows, 4H) f32 slab.

    The g-gate columns (2H:3H) of Wx/Whh/bias are pre-scaled by 2 so the kernel
    needs a single sigmoid pass (tanh(x) = 2*sigmoid(2x) - 1)."""
    hidden = params["w_hh"].shape[1]
    wx = params["w_ih"].T.astype(jnp.float32)                    # (d_in, 4H)
    wh = params["w_hh"].T.astype(jnp.float32)                    # (H, 4H)
    b = (params["b_ih"] + params["b_hh"]).astype(jnp.float32)    # (4H,)
    scale = jnp.ones((4 * hidden,), jnp.float32).at[2 * hidden:3 * hidden].set(2.0)
    wx = wx * scale
    wh = wh * scale
    b = b * scale

    rows = ((d_in_pad + hidden + 3 + 7) // 8) * 8
    slab = jnp.zeros((rows, 4 * hidden), jnp.float32)
    slab = slab.at[0:d_in, :].set(wx)
    slab = slab.at[d_in_pad:d_in_pad + hidden, :].set(wh)
    slab = slab.at[d_in_pad + hidden, :].set(b)
    slab = slab.at[d_in_pad + hidden + 1, 0:hidden].set(params["w_lin"][0])
    slab = slab.at[d_in_pad + hidden + 2, 0].set(params["b_lin"][0])
    return slab


def my_lstm_reference(x, params):
    """Pure-JAX reference of the same forward pass (unpacked PyTorch math)."""
    t, b, _ = x.shape
    hdim = params["w_hh"].shape[1]
    wih = params["w_ih"].T
    whh = params["w_hh"].T
    bias = (params["b_ih"] + params["b_hh"]).reshape(1, -1)

    def step(carry, x_t):
        h, c = carry
        pre = x_t @ wih + h @ whh + bias
        i = jax.nn.sigmoid(pre[:, 0 * hdim:1 * hdim])
        f = jax.nn.sigmoid(pre[:, 1 * hdim:2 * hdim])
        g = jnp.tanh(pre[:, 2 * hdim:3 * hdim])
        o = jax.nn.sigmoid(pre[:, 3 * hdim:4 * hdim])
        c_new = f * c + i * g
        h_new = o * jnp.tanh(c_new)
        y = jnp.maximum(h_new, 0.0) @ params["w_lin"].T + params["b_lin"]
        return (h_new, c_new), y

    init = (jnp.zeros((b, hdim), jnp.float32), jnp.zeros((b, hdim), jnp.float32))
    _, ys = jax.lax.scan(step, init, x)
    return ys


if __name__ == "__main__":
    key = jax.random.PRNGKey(0)
    kx, kp = jax.random.split(key)
    x = jax.random.normal(kx, (T, B, D_IN), jnp.float32)
    params = init_params(kp)
    slab = pack_params(params)

    out = my_lstm_forward(x, slab)
    out = jax.block_until_ready(out)

    ref = my_lstm_reference(x, params)
    assert out.shape == (T, B, 1)
    assert jnp.allclose(out, ref, atol=1e-4, rtol=1e-4)

    print("KERNEL_OK")
</pallas_src>

<mosaic_0001>
module attributes {stable_mosaic.version = 11 : i64} {
  func.func @lstm_kernel(%arg0: memref<16x16xf32, #tpu.memory_space<vmem>>, %arg1: memref<56x128xf32, #tpu.memory_space<vmem>>, %arg2: memref<16x1xf32, #tpu.memory_space<vmem>>) attributes {dimension_semantics = [], scalar_prefetch = 0 : i64, scratch_operands = 0 : i64, tpu.core_type = #tpu.core_type<tc>} {
    %c0 = arith.constant 0 : index
    %c0_0 = arith.constant 0 : index
    %0 = vector.load %arg1[%c0, %c0_0] : memref<56x128xf32, #tpu.memory_space<vmem>>, vector<16x128xf32>
    %c16 = arith.constant 16 : index
    %c0_1 = arith.constant 0 : index
    %1 = vector.load %arg1[%c16, %c0_1] : memref<56x128xf32, #tpu.memory_space<vmem>>, vector<32x128xf32>
    %c48 = arith.constant 48 : index
    %c0_2 = arith.constant 0 : index
    %2 = vector.load %arg1[%c48, %c0_2] : memref<56x128xf32, #tpu.memory_space<vmem>>, vector<1x128xf32>
    %c49 = arith.constant 49 : index
    %c0_3 = arith.constant 0 : index
    %3 = vector.load %arg1[%c49, %c0_3] : memref<56x128xf32, #tpu.memory_space<vmem>>, vector<1x32xf32>
    %c50 = arith.constant 50 : index
    %c0_4 = arith.constant 0 : index
    %4 = vector.load %arg1[%c50, %c0_4] : memref<56x128xf32, #tpu.memory_space<vmem>>, vector<1x1xf32>
    %c0_5 = arith.constant 0 : index
    %c0_6 = arith.constant 0 : index
    %5 = vector.load %arg0[%c0_5, %c0_6] : memref<16x16xf32, #tpu.memory_space<vmem>>, vector<16x16xf32>
    %cst = arith.constant dense<0.000000e+00> : vector<16x128xf32>
    %6 = tpu.matmul %5, %0, %cst {dimension_numbers = #tpu.dot_dimension_numbers<[1], [0], [0], [1], [0, 0, 1, 1], [], []>} : vector<16x16xf32>, vector<16x128xf32>, vector<16x128xf32> -> vector<16x128xf32>
    %7 = vector.broadcast %2 : vector<1x128xf32> to vector<16x128xf32>
    %8 = arith.addf %6, %7 : vector<16x128xf32>
    %cst_7 = arith.constant 0.000000e+00 : f32
    %9 = vector.broadcast %cst_7 : f32 to vector<2x32xf32>
    %cst_8 = arith.constant 0.000000e+00 : f32
    %10 = vector.broadcast %cst_8 : f32 to vector<2x32xf32>
    %11 = vector.extract_strided_slice %8 {offsets = [0, 0], sizes = [2, 128], strides = [1, 1]} : vector<16x128xf32> to vector<2x128xf32>
    %cst_9 = arith.constant dense<0.000000e+00> : vector<2x128xf32>
    %12 = tpu.matmul %9, %1, %cst_9 {dimension_numbers = #tpu.dot_dimension_numbers<[1], [0], [0], [1], [0, 0, 1, 1], [], []>} : vector<2x32xf32>, vector<32x128xf32>, vector<2x128xf32> -> vector<2x128xf32>
    %13 = arith.addf %11, %12 : vector<2x128xf32>
    %14 = arith.negf %13 : vector<2x128xf32>
    %15 = math.exp %14 : vector<2x128xf32>
    %cst_10 = arith.constant 1.000000e+00 : f32
    %16 = vector.broadcast %cst_10 : f32 to vector<2x128xf32>
    %17 = arith.addf %16, %15 : vector<2x128xf32>
    %18 = arith.divf %16, %17 : vector<2x128xf32>
    %19 = vector.extract_strided_slice %18 {offsets = [0, 0], sizes = [2, 32], strides = [1, 1]} : vector<2x128xf32> to vector<2x32xf32>
    %20 = vector.extract_strided_slice %18 {offsets = [0, 32], sizes = [2, 32], strides = [1, 1]} : vector<2x128xf32> to vector<2x32xf32>
    %21 = vector.extract_strided_slice %18 {offsets = [0, 64], sizes = [2, 32], strides = [1, 1]} : vector<2x128xf32> to vector<2x32xf32>
    %cst_11 = arith.constant 2.000000e+00 : f32
    %22 = vector.broadcast %cst_11 : f32 to vector<2x32xf32>
    %23 = arith.mulf %22, %21 : vector<2x32xf32>
    %cst_12 = arith.constant 1.000000e+00 : f32
    %24 = vector.broadcast %cst_12 : f32 to vector<2x32xf32>
    %25 = arith.subf %23, %24 : vector<2x32xf32>
    %26 = vector.extract_strided_slice %18 {offsets = [0, 96], sizes = [2, 32], strides = [1, 1]} : vector<2x128xf32> to vector<2x32xf32>
    %27 = arith.mulf %20, %10 : vector<2x32xf32>
    %28 = arith.mulf %19, %25 : vector<2x32xf32>
    %29 = arith.addf %27, %28 : vector<2x32xf32>
    %30 = math.tanh %29 : vector<2x32xf32>
    %31 = arith.mulf %26, %30 : vector<2x32xf32>
    %32 = vector.extract_strided_slice %8 {offsets = [2, 0], sizes = [2, 128], strides = [1, 1]} : vector<16x128xf32> to vector<2x128xf32>
    %cst_13 = arith.constant dense<0.000000e+00> : vector<2x128xf32>
    %33 = tpu.matmul %31, %1, %cst_13 {dimension_numbers = #tpu.dot_dimension_numbers<[1], [0], [0], [1], [0, 0, 1, 1], [], []>} : vector<2x32xf32>, vector<32x128xf32>, vector<2x128xf32> -> vector<2x128xf32>
    %34 = arith.addf %32, %33 : vector<2x128xf32>
    %35 = arith.negf %34 : vector<2x128xf32>
    %36 = math.exp %35 : vector<2x128xf32>
    %cst_14 = arith.constant 1.000000e+00 : f32
    %37 = vector.broadcast %cst_14 : f32 to vector<2x128xf32>
    %38 = arith.addf %37, %36 : vector<2x128xf32>
    %39 = arith.divf %37, %38 : vector<2x128xf32>
    %40 = vector.extract_strided_slice %39 {offsets = [0, 0], sizes = [2, 32], strides = [1, 1]} : vector<2x128xf32> to vector<2x32xf32>
    %41 = vector.extract_strided_slice %39 {offsets = [0, 32], sizes = [2, 32], strides = [1, 1]} : vector<2x128xf32> to vector<2x32xf32>
    %42 = vector.extract_strided_slice %39 {offsets = [0, 64], sizes = [2, 32], strides = [1, 1]} : vector<2x128xf32> to vector<2x32xf32>
    %cst_15 = arith.constant 2.000000e+00 : f32
    %43 = vector.broadcast %cst_15 : f32 to vector<2x32xf32>
    %44 = arith.mulf %43, %42 : vector<2x32xf32>
    %cst_16 = arith.constant 1.000000e+00 : f32
    %45 = vector.broadcast %cst_16 : f32 to vector<2x32xf32>
    %46 = arith.subf %44, %45 : vector<2x32xf32>
    %47 = vector.extract_strided_slice %39 {offsets = [0, 96], sizes = [2, 32], strides = [1, 1]} : vector<2x128xf32> to vector<2x32xf32>
    %48 = arith.mulf %41, %29 : vector<2x32xf32>
    %49 = arith.mulf %40, %46 : vector<2x32xf32>
    %50 = arith.addf %48, %49 : vector<2x32xf32>
    %51 = math.tanh %50 : vector<2x32xf32>
    %52 = arith.mulf %47, %51 : vector<2x32xf32>
    %53 = vector.extract_strided_slice %8 {offsets = [4, 0], sizes = [2, 128], strides = [1, 1]} : vector<16x128xf32> to vector<2x128xf32>
    %cst_17 = arith.constant dense<0.000000e+00> : vector<2x128xf32>
    %54 = tpu.matmul %52, %1, %cst_17 {dimension_numbers = #tpu.dot_dimension_numbers<[1], [0], [0], [1], [0, 0, 1, 1], [], []>} : vector<2x32xf32>, vector<32x128xf32>, vector<2x128xf32> -> vector<2x128xf32>
    %55 = arith.addf %53, %54 : vector<2x128xf32>
    %56 = arith.negf %55 : vector<2x128xf32>
    %57 = math.exp %56 : vector<2x128xf32>
    %cst_18 = arith.constant 1.000000e+00 : f32
    %58 = vector.broadcast %cst_18 : f32 to vector<2x128xf32>
    %59 = arith.addf %58, %57 : vector<2x128xf32>
    %60 = arith.divf %58, %59 : vector<2x128xf32>
    %61 = vector.extract_strided_slice %60 {offsets = [0, 0], sizes = [2, 32], strides = [1, 1]} : vector<2x128xf32> to vector<2x32xf32>
    %62 = vector.extract_strided_slice %60 {offsets = [0, 32], sizes = [2, 32], strides = [1, 1]} : vector<2x128xf32> to vector<2x32xf32>
    %63 = vector.extract_strided_slice %60 {offsets = [0, 64], sizes = [2, 32], strides = [1, 1]} : vector<2x128xf32> to vector<2x32xf32>
    %cst_19 = arith.constant 2.000000e+00 : f32
    %64 = vector.broadcast %cst_19 : f32 to vector<2x32xf32>
    %65 = arith.mulf %64, %63 : vector<2x32xf32>
    %cst_20 = arith.constant 1.000000e+00 : f32
    %66 = vector.broadcast %cst_20 : f32 to vector<2x32xf32>
    %67 = arith.subf %65, %66 : vector<2x32xf32>
    %68 = vector.extract_strided_slice %60 {offsets = [0, 96], sizes = [2, 32], strides = [1, 1]} : vector<2x128xf32> to vector<2x32xf32>
    %69 = arith.mulf %62, %50 : vector<2x32xf32>
    %70 = arith.mulf %61, %67 : vector<2x32xf32>
    %71 = arith.addf %69, %70 : vector<2x32xf32>
    %72 = math.tanh %71 : vector<2x32xf32>
    %73 = arith.mulf %68, %72 : vector<2x32xf32>
    %74 = vector.extract_strided_slice %8 {offsets = [6, 0], sizes = [2, 128], strides = [1, 1]} : vector<16x128xf32> to vector<2x128xf32>
    %cst_21 = arith.constant dense<0.000000e+00> : vector<2x128xf32>
    %75 = tpu.matmul %73, %1, %cst_21 {dimension_numbers = #tpu.dot_dimension_numbers<[1], [0], [0], [1], [0, 0, 1, 1], [], []>} : vector<2x32xf32>, vector<32x128xf32>, vector<2x128xf32> -> vector<2x128xf32>
    %76 = arith.addf %74, %75 : vector<2x128xf32>
    %77 = arith.negf %76 : vector<2x128xf32>
    %78 = math.exp %77 : vector<2x128xf32>
    %cst_22 = arith.constant 1.000000e+00 : f32
    %79 = vector.broadcast %cst_22 : f32 to vector<2x128xf32>
    %80 = arith.addf %79, %78 : vector<2x128xf32>
    %81 = arith.divf %79, %80 : vector<2x128xf32>
    %82 = vector.extract_strided_slice %81 {offsets = [0, 0], sizes = [2, 32], strides = [1, 1]} : vector<2x128xf32> to vector<2x32xf32>
    %83 = vector.extract_strided_slice %81 {offsets = [0, 32], sizes = [2, 32], strides = [1, 1]} : vector<2x128xf32> to vector<2x32xf32>
    %84 = vector.extract_strided_slice %81 {offsets = [0, 64], sizes = [2, 32], strides = [1, 1]} : vector<2x128xf32> to vector<2x32xf32>
    %cst_23 = arith.constant 2.000000e+00 : f32
    %85 = vector.broadcast %cst_23 : f32 to vector<2x32xf32>
    %86 = arith.mulf %85, %84 : vector<2x32xf32>
    %cst_24 = arith.constant 1.000000e+00 : f32
    %87 = vector.broadcast %cst_24 : f32 to vector<2x32xf32>
    %88 = arith.subf %86, %87 : vector<2x32xf32>
    %89 = vector.extract_strided_slice %81 {offsets = [0, 96], sizes = [2, 32], strides = [1, 1]} : vector<2x128xf32> to vector<2x32xf32>
    %90 = arith.mulf %83, %71 : vector<2x32xf32>
    %91 = arith.mulf %82, %88 : vector<2x32xf32>
    %92 = arith.addf %90, %91 : vector<2x32xf32>
    %93 = math.tanh %92 : vector<2x32xf32>
    %94 = arith.mulf %89, %93 : vector<2x32xf32>
    %95 = vector.extract_strided_slice %8 {offsets = [8, 0], sizes = [2, 128], strides = [1, 1]} : vector<16x128xf32> to vector<2x128xf32>
    %cst_25 = arith.constant dense<0.000000e+00> : vector<2x128xf32>
    %96 = tpu.matmul %94, %1, %cst_25 {dimension_numbers = #tpu.dot_dimension_numbers<[1], [0], [0], [1], [0, 0, 1, 1], [], []>} : vector<2x32xf32>, vector<32x128xf32>, vector<2x128xf32> -> vector<2x128xf32>
    %97 = arith.addf %95, %96 : vector<2x128xf32>
    %98 = arith.negf %97 : vector<2x128xf32>
    %99 = math.exp %98 : vector<2x128xf32>
    %cst_26 = arith.constant 1.000000e+00 : f32
    %100 = vector.broadcast %cst_26 : f32 to vector<2x128xf32>
    %101 = arith.addf %100, %99 : vector<2x128xf32>
    %102 = arith.divf %100, %101 : vector<2x128xf32>
    %103 = vector.extract_strided_slice %102 {offsets = [0, 0], sizes = [2, 32], strides = [1, 1]} : vector<2x128xf32> to vector<2x32xf32>
    %104 = vector.extract_strided_slice %102 {offsets = [0, 32], sizes = [2, 32], strides = [1, 1]} : vector<2x128xf32> to vector<2x32xf32>
    %105 = vector.extract_strided_slice %102 {offsets = [0, 64], sizes = [2, 32], strides = [1, 1]} : vector<2x128xf32> to vector<2x32xf32>
    %cst_27 = arith.constant 2.000000e+00 : f32
    %106 = vector.broadcast %cst_27 : f32 to vector<2x32xf32>
    %107 = arith.mulf %106, %105 : vector<2x32xf32>
    %cst_28 = arith.constant 1.000000e+00 : f32
    %108 = vector.broadcast %cst_28 : f32 to vector<2x32xf32>
    %109 = arith.subf %107, %108 : vector<2x32xf32>
    %110 = vector.extract_strided_slice %102 {offsets = [0, 96], sizes = [2, 32], strides = [1, 1]} : vector<2x128xf32> to vector<2x32xf32>
    %111 = arith.mulf %104, %92 : vector<2x32xf32>
    %112 = arith.mulf %103, %109 : vector<2x32xf32>
    %113 = arith.addf %111, %112 : vector<2x32xf32>
    %114 = math.tanh %113 : vector<2x32xf32>
    %115 = arith.mulf %110, %114 : vector<2x32xf32>
    %116 = vector.extract_strided_slice %8 {offsets = [10, 0], sizes = [2, 128], strides = [1, 1]} : vector<16x128xf32> to vector<2x128xf32>
    %cst_29 = arith.constant dense<0.000000e+00> : vector<2x128xf32>
    %117 = tpu.matmul %115, %1, %cst_29 {dimension_numbers = #tpu.dot_dimension_numbers<[1], [0], [0], [1], [0, 0, 1, 1], [], []>} : vector<2x32xf32>, vector<32x128xf32>, vector<2x128xf32> -> vector<2x128xf32>
    %118 = arith.addf %116, %117 : vector<2x128xf32>
    %119 = arith.negf %118 : vector<2x128xf32>
    %120 = math.exp %119 : vector<2x128xf32>
    %cst_30 = arith.constant 1.000000e+00 : f32
    %121 = vector.broadcast %cst_30 : f32 to vector<2x128xf32>
    %122 = arith.addf %121, %120 : vector<2x128xf32>
    %123 = arith.divf %121, %122 : vector<2x128xf32>
    %124 = vector.extract_strided_slice %123 {offsets = [0, 0], sizes = [2, 32], strides = [1, 1]} : vector<2x128xf32> to vector<2x32xf32>
    %125 = vector.extract_strided_slice %123 {offsets = [0, 32], sizes = [2, 32], strides = [1, 1]} : vector<2x128xf32> to vector<2x32xf32>
    %126 = vector.extract_strided_slice %123 {offsets = [0, 64], sizes = [2, 32], strides = [1, 1]} : vector<2x128xf32> to vector<2x32xf32>
    %cst_31 = arith.constant 2.000000e+00 : f32
    %127 = vector.broadcast %cst_31 : f32 to vector<2x32xf32>
    %128 = arith.mulf %127, %126 : vector<2x32xf32>
    %cst_32 = arith.constant 1.000000e+00 : f32
    %129 = vector.broadcast %cst_32 : f32 to vector<2x32xf32>
    %130 = arith.subf %128, %129 : vector<2x32xf32>
    %131 = vector.extract_strided_slice %123 {offsets = [0, 96], sizes = [2, 32], strides = [1, 1]} : vector<2x128xf32> to vector<2x32xf32>
    %132 = arith.mulf %125, %113 : vector<2x32xf32>
    %133 = arith.mulf %124, %130 : vector<2x32xf32>
    %134 = arith.addf %132, %133 : vector<2x32xf32>
    %135 = math.tanh %134 : vector<2x32xf32>
    %136 = arith.mulf %131, %135 : vector<2x32xf32>
    %137 = vector.extract_strided_slice %8 {offsets = [12, 0], sizes = [2, 128], strides = [1, 1]} : vector<16x128xf32> to vector<2x128xf32>
    %cst_33 = arith.constant dense<0.000000e+00> : vector<2x128xf32>
    %138 = tpu.matmul %136, %1, %cst_33 {dimension_numbers = #tpu.dot_dimension_numbers<[1], [0], [0], [1], [0, 0, 1, 1], [], []>} : vector<2x32xf32>, vector<32x128xf32>, vector<2x128xf32> -> vector<2x128xf32>
    %139 = arith.addf %137, %138 : vector<2x128xf32>
    %140 = arith.negf %139 : vector<2x128xf32>
    %141 = math.exp %140 : vector<2x128xf32>
    %cst_34 = arith.constant 1.000000e+00 : f32
    %142 = vector.broadcast %cst_34 : f32 to vector<2x128xf32>
    %143 = arith.addf %142, %141 : vector<2x128xf32>
    %144 = arith.divf %142, %143 : vector<2x128xf32>
    %145 = vector.extract_strided_slice %144 {offsets = [0, 0], sizes = [2, 32], strides = [1, 1]} : vector<2x128xf32> to vector<2x32xf32>
    %146 = vector.extract_strided_slice %144 {offsets = [0, 32], sizes = [2, 32], strides = [1, 1]} : vector<2x128xf32> to vector<2x32xf32>
    %147 = vector.extract_strided_slice %144 {offsets = [0, 64], sizes = [2, 32], strides = [1, 1]} : vector<2x128xf32> to vector<2x32xf32>
    %cst_35 = arith.constant 2.000000e+00 : f32
    %148 = vector.broadcast %cst_35 : f32 to vector<2x32xf32>
    %149 = arith.mulf %148, %147 : vector<2x32xf32>
    %cst_36 = arith.constant 1.000000e+00 : f32
    %150 = vector.broadcast %cst_36 : f32 to vector<2x32xf32>
    %151 = arith.subf %149, %150 : vector<2x32xf32>
    %152 = vector.extract_strided_slice %144 {offsets = [0, 96], sizes = [2, 32], strides = [1, 1]} : vector<2x128xf32> to vector<2x32xf32>
    %153 = arith.mulf %146, %134 : vector<2x32xf32>
    %154 = arith.mulf %145, %151 : vector<2x32xf32>
    %155 = arith.addf %153, %154 : vector<2x32xf32>
    %156 = math.tanh %155 : vector<2x32xf32>
    %157 = arith.mulf %152, %156 : vector<2x32xf32>
    %158 = vector.extract_strided_slice %8 {offsets = [14, 0], sizes = [2, 128], strides = [1, 1]} : vector<16x128xf32> to vector<2x128xf32>
    %cst_37 = arith.constant dense<0.000000e+00> : vector<2x128xf32>
    %159 = tpu.matmul %157, %1, %cst_37 {dimension_numbers = #tpu.dot_dimension_numbers<[1], [0], [0], [1], [0, 0, 1, 1], [], []>} : vector<2x32xf32>, vector<32x128xf32>, vector<2x128xf32> -> vector<2x128xf32>
    %160 = arith.addf %158, %159 : vector<2x128xf32>
    %161 = arith.negf %160 : vector<2x128xf32>
    %162 = math.exp %161 : vector<2x128xf32>
    %cst_38 = arith.constant 1.000000e+00 : f32
    %163 = vector.broadcast %cst_38 : f32 to vector<2x128xf32>
    %164 = arith.addf %163, %162 : vector<2x128xf32>
    %165 = arith.divf %163, %164 : vector<2x128xf32>
    %166 = vector.extract_strided_slice %165 {offsets = [0, 0], sizes = [2, 32], strides = [1, 1]} : vector<2x128xf32> to vector<2x32xf32>
    %167 = vector.extract_strided_slice %165 {offsets = [0, 32], sizes = [2, 32], strides = [1, 1]} : vector<2x128xf32> to vector<2x32xf32>
    %168 = vector.extract_strided_slice %165 {offsets = [0, 64], sizes = [2, 32], strides = [1, 1]} : vector<2x128xf32> to vector<2x32xf32>
    %cst_39 = arith.constant 2.000000e+00 : f32
    %169 = vector.broadcast %cst_39 : f32 to vector<2x32xf32>
    %170 = arith.mulf %169, %168 : vector<2x32xf32>
    %cst_40 = arith.constant 1.000000e+00 : f32
    %171 = vector.broadcast %cst_40 : f32 to vector<2x32xf32>
    %172 = arith.subf %170, %171 : vector<2x32xf32>
    %173 = vector.extract_strided_slice %165 {offsets = [0, 96], sizes = [2, 32], strides = [1, 1]} : vector<2x128xf32> to vector<2x32xf32>
    %174 = arith.mulf %167, %155 : vector<2x32xf32>
    %175 = arith.mulf %166, %172 : vector<2x32xf32>
    %176 = arith.addf %174, %175 : vector<2x32xf32>
    %177 = math.tanh %176 : vector<2x32xf32>
    %178 = arith.mulf %173, %177 : vector<2x32xf32>
    %179 = tpu.concatenate %31, %52, %73, %94, %115, %136, %157, %178 in 0 : vector<2x32xf32>, vector<2x32xf32>, vector<2x32xf32>, vector<2x32xf32>, vector<2x32xf32>, vector<2x32xf32>, vector<2x32xf32>, vector<2x32xf32> -> vector<16x32xf32>
    %cst_41 = arith.constant 0.000000e+00 : f32
    %180 = vector.broadcast %cst_41 : f32 to vector<16x32xf32>
    %181 = arith.maximumf %179, %180 : vector<16x32xf32>
    %182 = vector.broadcast %3 : vector<1x32xf32> to vector<16x32xf32>
    %183 = arith.mulf %181, %182 : vector<16x32xf32>
    %cst_42 = arith.constant dense<0.000000e+00> : vector<16xf32>
    %184 = vector.multi_reduction <add>, %183, %cst_42 [1] : vector<16x32xf32> to vector<16xf32>
    %185 = vector.shape_cast %184 : vector<16xf32> to vector<16x1xf32>
    %186 = vector.broadcast %4 : vector<1x1xf32> to vector<16x1xf32>
    %187 = arith.addf %185, %186 : vector<16x1xf32>
    %c0_43 = arith.constant 0 : index
    %c0_44 = arith.constant 0 : index
    %188 = vector.load %arg2[%c0_43, %c0_44] : memref<16x1xf32, #tpu.memory_space<vmem>>, vector<16x1xf32>
    tpu.vector_store %arg2[%c0_43, %c0_44], %187 {strides = array<i32>} : memref<16x1xf32, #tpu.memory_space<vmem>>, vector<16x1xf32>,
    return
  }
}

</mosaic_0001>

<llo_original>
// kernel: tpu_custom_call.1
$region0: #{tpu_custom_call.1}
  #allocation0 [shape = 'u32[]', space=smem, size = 0x4, offset = 0x4, fixed_abs, tag = 'smem constant byte address 0x4 - core index']
  #allocation1 [shape = 'u32[144,128]{1,0:T(1,128)}', space=vmem, size = 0x12000, scoped, tag = 'internal scratch']
  %s0 = inlined_call_operand.hbm [shape: f32[16,16], index: 0, kind: input, shape index: {}]
  %s1 = inlined_call_operand.hbm [shape: f32[56,128], index: 1, kind: input, shape index: {}]
  %s2 = inlined_call_operand.vmem [shape: f32[16,1], index: 2, kind: output, shape index: {}]
  %s3 = sld [smem:[#allocation0]]
  $region26: #{tpu_custom_call.1} parent=0
    _
  %s5 = ssub.s32 1, %s3
  %s6 = scalar_select 0, %s5, %s3
  $region1: #{tpu_custom_call.1} parent=0
    #allocation2 [shape = 'u8[8192]{0}', space=vmem, size = 0x2000, scoped, tag = 'input window, operand 0, single buffered']
    #allocation3 [shape = 's32[1]{0}', space=sflag, size = 0x4, scoped, tag = 'scoped memory for tpu_custom_call.1']
    #allocation4 [shape = 'u8[28672]{0}', space=vmem, size = 0x7000, scoped, tag = 'input window, operand 1, single buffered']
    #allocation5 [shape = 's32[1]{0}', space=sflag, size = 0x4, scoped, tag = 'scoped memory for tpu_custom_call.1']
    %7 = vsyncpa [#allocation3], 0
    %8 = vsyncpa [#allocation5], 0
    // Predicated region
    $region2: #{tpu_custom_call.1} parent=1 // pred_check
      _
    $region3: #{tpu_custom_call.1} parent=1 // pred_check_branch
      %10 = sbr.rel (0) target = $region5
    $region4: #{tpu_custom_call.1} parent=1 // pred_region
      %s12 = ssub.s32 256, 256
      %13 = vsyncadd [#allocation3], %s12
      %s14 = sshll.u32 [#allocation2], 4
      %s15 = int_to_ptr.vmem [resolvable:$true] %s14
      %20 = dma.hbm_to_vmem [thread:$0]  %s0, 256, %s15, [#allocation3], 128, 128, 8
    $region5: #{tpu_custom_call.1} parent=1 // pred_fallthru
      _
    // Predicated region
    $region6: #{tpu_custom_call.1} parent=1 // pred_check
      _
    $region7: #{tpu_custom_call.1} parent=1 // pred_check_branch
      %22 = sbr.rel (0) target = $region9
    $region8: #{tpu_custom_call.1} parent=1 // pred_region
      %s24 = ssub.s32 896, 896
      %25 = vsyncadd [#allocation5], %s24
      %s26 = sshll.u32 [#allocation4], 4
      %s27 = int_to_ptr.vmem [resolvable:$true] %s26
      %32 = dma.hbm_to_vmem [thread:$0]  %s1, 896, %s27, [#allocation5], 128, 128, 8
    $region9: #{tpu_custom_call.1} parent=1 // pred_fallthru
      _
    // Predicated region
    $region10: #{tpu_custom_call.1} parent=1 // pred_check
      _
    $region11: #{tpu_custom_call.1} parent=1 // pred_check_branch
      %34 = sbr.rel (0) target = $region13
    $region12: #{tpu_custom_call.1} parent=1 // pred_region
      %35 = dma.done [#allocation3], 256
    $region13: #{tpu_custom_call.1} parent=1 // pred_fallthru
      _
    // Predicated region
    $region14: #{tpu_custom_call.1} parent=1 // pred_check
      _
    $region15: #{tpu_custom_call.1} parent=1 // pred_check_branch
      %37 = sbr.rel (0) target = $region17
    $region16: #{tpu_custom_call.1} parent=1 // pred_region
      %38 = dma.done [#allocation5], 896
    $region17: #{tpu_custom_call.1} parent=1 // pred_fallthru
      _
    %v39 = vld [vmem:[#allocation4] sm:$0xff]
    %v40 = vld [vmem:[#allocation4 + $0x8] sm:$0xff]
    %v41 = vld [vmem:[#allocation4 + $0x10] sm:$0xff]
    %v42 = vld [vmem:[#allocation4 + $0x18] sm:$0xff]
    %v43 = vld [vmem:[#allocation4 + $0x20] sm:$0xff]
    %v44 = vld [vmem:[#allocation4 + $0x28] sm:$0xff]
    %v45 = vld [vmem:[#allocation4 + $0x30] sm:$0x1]
    %v46 = vld [vmem:[#allocation4 + $0x31] sm:$0x1]
    %v47 = vld [vmem:[#allocation4 + $0x32] sm:$0x1]
    %v48 = vld [vmem:[#allocation2] sm:$0xff]
    %v49 = vld [vmem:[#allocation2 + $0x8] sm:$0xff]
    %v50 = vlaneseq
    %v51 = vshrl.u32 %v50, 7
    %v52 = vsub.s32 0, %v51
    %v53 = vrot.slane %v45, %v52
    %vm54 = vcmask 130048
    %v56 = vsel %vm54, %v48, 0
    %v59 = vsel %vm54, %v49, 0
    %61 = vmatprep.subr.mxu0 0.0
    %62 = vmatpush1.msra.mxu0 %v39
    %63 = vmatprep.subr.mxu0 0.0
    %64 = vmatpush1.msra.mxu0 %v40
    %65 = vmatprep.subr.mxu0 0.0
    %66 = vmatpush1.msra.mxu0 0.0
    %67 = vmatprep.subr.mxu0 0.0
    %68 = vmatpush1.msra.mxu0 0.0
    %69 = vmatprep.subr.mxu0 0.0
    %70 = vmatpush1.msra.mxu0 0.0
    %71 = vmatprep.subr.mxu0 0.0
    %72 = vmatpush1.msra.mxu0 0.0
    %73 = vmatprep.subr.mxu0 0.0
    %74 = vmatpush1.msra.mxu0 0.0
    %75 = vmatprep.subr.mxu0 0.0
    %76 = vmatpush1.msra.mxu0 0.0
    %77 = vmatprep.subr.mxu0 0.0
    %78 = vmatpush1.msra.mxu0 0.0
    %79 = vmatprep.subr.mxu0 0.0
    %80 = vmatpush1.msra.mxu0 0.0
    %81 = vmatprep.subr.mxu0 0.0
    %82 = vmatpush1.msra.mxu0 0.0
    %83 = vmatprep.subr.mxu0 0.0
    %84 = vmatpush1.msra.mxu0 0.0
    %85 = vmatprep.subr.mxu0 0.0
    %86 = vmatpush1.msra.mxu0 0.0
    %87 = vmatprep.subr.mxu0 0.0
    %88 = vmatpush1.msra.mxu0 0.0
    %89 = vmatprep.subr.mxu0 0.0
    %90 = vmatpush1.msra.mxu0 0.0
    %91 = vmatprep.subr.mxu0 0.0
    %92 = vmatpush1.msra.mxu0 0.0
    %93 = vmatprep.subr.mxu0 0.0
    %94 = vmatpush1.msra.mxu0 0.0
    %95 = vmatprep.subr.mxu0 0.0
    %96 = vmatpush1.msra.mxu0 0.0
    %97 = vmatprep.subr.mxu0 0.0
    %98 = vmatpush1.msra.mxu0 0.0
    %99 = vmatprep.subr.mxu0 0.0
    %100 = vmatpush1.msra.mxu0 0.0
    %101 = vmatprep.subr.mxu0 0.0
    %102 = vmatpush1.msra.mxu0 0.0
    %103 = vmatprep.subr.mxu0 0.0
    %104 = vmatpush1.msra.mxu0 0.0
    %105 = vmatprep.subr.mxu0 0.0
    %106 = vmatpush1.msra.mxu0 0.0
    %107 = vmatprep.subr.mxu0 0.0
    %108 = vmatpush1.msra.mxu0 0.0
    %109 = vmatprep.subr.mxu0 0.0
    %110 = vmatpush1.msra.mxu0 0.0
    %111 = vmatprep.subr.mxu0 0.0
    %112 = vmatpush1.msra.mxu0 0.0
    %113 = vmatprep.subr.mxu0 0.0
    %114 = vmatpush1.msra.mxu0 0.0
    %115 = vmatprep.subr.mxu0 0.0
    %116 = vmatpush1.msra.mxu0 0.0
    %117 = vmatprep.subr.mxu0 0.0
    %118 = vmatpush1.msra.mxu0 0.0
    %119 = vmatprep.subr.mxu0 0.0
    %120 = vmatpush1.msra.mxu0 0.0
    %121 = vmatprep.subr.mxu0 0.0
    %122 = vmatpush1.msra.mxu0 0.0
    %123 = vmatprep.subr.mxu0 0.0
    %124 = vmatpush1.msra.mxu0 0.0
    %125 = vmatprep.mubr.f32.mxu0 0.0
    %126 = vmatmul.mubr.f32.gmra.mrb[0].mxu0 %v56
    %v127 = vpop.f32.mrb[0].mxu0
    %v128 = vadd.f32 %v53, %v127
    %v129 = vpop.f32.mrb[0].mxu0
    %130 = vmatprep.mubr.f32.mxu0 0.0
    %131 = vmatmul.mubr.f32.gmra.mrb[0].mxu0 %v59
    %v132 = vpop.f32.mrb[0].mxu0
    %v133 = vadd.f32 %v53, %v132
    %v134 = vpop.f32.mrb[0].mxu0
    %135 = vdwg.mxu0
    %vm136 = vcmask 261120
    %v138 = vsel %vm136, 0.0, 0
    %140 = vmatprep.subr.mxu0 0.0
    %141 = vmatpush1.msra.mxu0 %v41
    %142 = vmatprep.subr.mxu0 0.0
    %143 = vmatpush1.msra.mxu0 %v42
    %144 = vmatprep.subr.mxu0 0.0
    %145 = vmatpush1.msra.mxu0 %v43
    %146 = vmatprep.subr.mxu0 0.0
    %147 = vmatpush1.msra.mxu0 %v44
    %148 = vmatprep.subr.mxu0 0.0
    %149 = vmatpush1.msra.mxu0 0.0
    %150 = vmatprep.subr.mxu0 0.0
    %151 = vmatpush1.msra.mxu0 0.0
    %152 = vmatprep.subr.mxu0 0.0
    %153 = vmatpush1.msra.mxu0 0.0
    %154 = vmatprep.subr.mxu0 0.0
    %155 = vmatpush1.msra.mxu0 0.0
    %156 = vmatprep.subr.mxu0 0.0
    %157 = vmatpush1.msra.mxu0 0.0
    %158 = vmatprep.subr.mxu0 0.0
    %159 = vmatpush1.msra.mxu0 0.0
    %160 = vmatprep.subr.mxu0 0.0
    %161 = vmatpush1.msra.mxu0 0.0
    %162 = vmatprep.subr.mxu0 0.0
    %163 = vmatpush1.msra.mxu0 0.0
    %164 = vmatprep.subr.mxu0 0.0
    %165 = vmatpush1.msra.mxu0 0.0
    %166 = vmatprep.subr.mxu0 0.0
    %167 = vmatpush1.msra.mxu0 0.0
    %168 = vmatprep.subr.mxu0 0.0
    %169 = vmatpush1.msra.mxu0 0.0
    %170 = vmatprep.subr.mxu0 0.0
    %171 = vmatpush1.msra.mxu0 0.0
    %172 = vmatprep.subr.mxu0 0.0
    %173 = vmatpush1.msra.mxu0 0.0
    %174 = vmatprep.subr.mxu0 0.0
    %175 = vmatpush1.msra.mxu0 0.0
    %176 = vmatprep.subr.mxu0 0.0
    %177 = vmatpush1.msra.mxu0 0.0
    %178 = vmatprep.subr.mxu0 0.0
    %179 = vmatpush1.msra.mxu0 0.0
    %180 = vmatprep.subr.mxu0 0.0
    %181 = vmatpush1.msra.mxu0 0.0
    %182 = vmatprep.subr.mxu0 0.0
    %183 = vmatpush1.msra.mxu0 0.0
    %184 = vmatprep.subr.mxu0 0.0
    %185 = vmatpush1.msra.mxu0 0.0
    %186 = vmatprep.subr.mxu0 0.0
    %187 = vmatpush1.msra.mxu0 0.0
    %188 = vmatprep.subr.mxu0 0.0
    %189 = vmatpush1.msra.mxu0 0.0
    %190 = vmatprep.subr.mxu0 0.0
    %191 = vmatpush1.msra.mxu0 0.0
    %192 = vmatprep.subr.mxu0 0.0
    %193 = vmatpush1.msra.mxu0 0.0
    %194 = vmatprep.subr.mxu0 0.0
    %195 = vmatpush1.msra.mxu0 0.0
    %196 = vmatprep.subr.mxu0 0.0
    %197 = vmatpush1.msra.mxu0 0.0
    %198 = vmatprep.subr.mxu0 0.0
    %199 = vmatpush1.msra.mxu0 0.0
    %200 = vmatprep.subr.mxu0 0.0
    %201 = vmatpush1.msra.mxu0 0.0
    %202 = vmatprep.subr.mxu0 0.0
    %203 = vmatpush1.msra.mxu0 0.0
    %204 = vmatprep.mubr.f32.mxu0 0.0
    %205 = vmatmul.mubr.f32.gmra.mrb[0].mxu0 %v138
    %v206 = vpop.f32.mrb[0].mxu0
    %v207 = vadd.f32 0.0, %v206
    %v208 = vpop.f32.mrb[0].mxu0
    %209 = vdwg.mxu0
    %v210 = vadd.f32 %v128, %v207
    %v211 = vxor.u32 %v210, 2147483648
    %v212 = vmul.f32 %v211, 1.442695
    %v213 = vpow.pop %v212
    %v214 = vadd.f32 %v213, 1.0
    %v215 = vrcp.pop %v214
    %v216 = vmul.f32 1.0, %v215
    %v217 = vmul.f32 %v216, 2.0
    %v218 = vsub.f32 %v217, 1.0
    %v219 = vmul.f32 %v216, 0.0
    %221 = vrot.lane.b32.xlu0 %v218, 64
    %v222 = vpop.permute.xlu0 %221
    %v224 = vmul.f32 %v216, %v222
    %226 = vrot.lane.b32.xlu0 %v224, 32
    %v227 = vpop.permute.xlu0 %226
    %v229 = vadd.f32 %v219, %v227
    %v230 = vtanh.pop %v229
    %232 = vrot.lane.b32.xlu0 %v230, 64
    %v233 = vpop.permute.xlu0 %232
    %v235 = vmul.f32 %v216, %v233
    %237 = vrot.lane.b32.xlu0 %v235, 32
    %v238 = vpop.permute.xlu0 %237
    %v239 = vsel %vm136, %v238, 0
    %241 = vmatprep.subr.mxu0 0.0
    %242 = vmatpush1.msra.mxu0 %v41
    %243 = vmatprep.subr.mxu0 0.0
    %244 = vmatpush1.msra.mxu0 %v42
    %245 = vmatprep.subr.mxu0 0.0
    %246 = vmatpush1.msra.mxu0 %v43
    %247 = vmatprep.subr.mxu0 0.0
    %248 = vmatpush1.msra.mxu0 %v44
    %249 = vmatprep.subr.mxu0 0.0
    %250 = vmatpush1.msra.mxu0 0.0
    %251 = vmatprep.subr.mxu0 0.0
    %252 = vmatpush1.msra.mxu0 0.0
    %253 = vmatprep.subr.mxu0 0.0
    %254 = vmatpush1.msra.mxu0 0.0
    %255 = vmatprep.subr.mxu0 0.0
    %256 = vmatpush1.msra.mxu0 0.0
    %257 = vmatprep.subr.mxu0 0.0
    %258 = vmatpush1.msra.mxu0 0.0
    %259 = vmatprep.subr.mxu0 0.0
    %260 = vmatpush1.msra.mxu0 0.0
    %261 = vmatprep.subr.mxu0 0.0
    %262 = vmatpush1.msra.mxu0 0.0
    %263 = vmatprep.subr.mxu0 0.0
    %264 = vmatpush1.msra.mxu0 0.0
    %265 = vmatprep.subr.mxu0 0.0
    %266 = vmatpush1.msra.mxu0 0.0
    %267 = vmatprep.subr.mxu0 0.0
    %268 = vmatpush1.msra.mxu0 0.0
    %269 = vmatprep.subr.mxu0 0.0
    %270 = vmatpush1.msra.mxu0 0.0
    %271 = vmatprep.subr.mxu0 0.0
    %272 = vmatpush1.msra.mxu0 0.0
    %273 = vmatprep.subr.mxu0 0.0
    %274 = vmatpush1.msra.mxu0 0.0
    %275 = vmatprep.subr.mxu0 0.0
    %276 = vmatpush1.msra.mxu0 0.0
    %277 = vmatprep.subr.mxu0 0.0
    %278 = vmatpush1.msra.mxu0 0.0
    %279 = vmatprep.subr.mxu0 0.0
    %280 = vmatpush1.msra.mxu0 0.0
    %281 = vmatprep.subr.mxu0 0.0
    %282 = vmatpush1.msra.mxu0 0.0
    %283 = vmatprep.subr.mxu0 0.0
    %284 = vmatpush1.msra.mxu0 0.0
    %285 = vmatprep.subr.mxu0 0.0
    %286 = vmatpush1.msra.mxu0 0.0
    %287 = vmatprep.subr.mxu0 0.0
    %288 = vmatpush1.msra.mxu0 0.0
    %289 = vmatprep.subr.mxu0 0.0
    %290 = vmatpush1.msra.mxu0 0.0
    %291 = vmatprep.subr.mxu0 0.0
    %292 = vmatpush1.msra.mxu0 0.0
    %293 = vmatprep.subr.mxu0 0.0
    %294 = vmatpush1.msra.mxu0 0.0
    %295 = vmatprep.subr.mxu0 0.0
    %296 = vmatpush1.msra.mxu0 0.0
    %297 = vmatprep.subr.mxu0 0.0
    %298 = vmatpush1.msra.mxu0 0.0
    %299 = vmatprep.subr.mxu0 0.0
    %300 = vmatpush1.msra.mxu0 0.0
    %301 = vmatprep.subr.mxu0 0.0
    %302 = vmatpush1.msra.mxu0 0.0
    %303 = vmatprep.subr.mxu0 0.0
    %304 = vmatpush1.msra.mxu0 0.0
    %305 = vmatprep.mubr.f32.mxu0 0.0
    %306 = vmatmul.mubr.f32.gmra.mrb[0].mxu0 %v239
    %v307 = vpop.f32.mrb[0].mxu0
    %v308 = vadd.f32 0.0, %v307
    %v309 = vpop.f32.mrb[0].mxu0
    %310 = vdwg.mxu0
    %v312 = vrot.slane %v308, 6
    %v314 = vadd.f32 %v128, %v312
    %v315 = vxor.u32 %v314, 2147483648
    %v316 = vmul.f32 %v315, 1.442695
    %v317 = vpow.pop %v316
    %v318 = vadd.f32 %v317, 1.0
    %v319 = vrcp.pop %v318
    %v320 = vmul.f32 1.0, %v319
    %v321 = vmul.f32 %v320, 2.0
    %v322 = vsub.f32 %v321, 1.0
    %v324 = vrot.slane %v229, 6
    %v326 = vmul.f32 %v320, %v324
    %328 = vrot.lane.b32.xlu0 %v322, 64
    %v329 = vpop.permute.xlu0 %328
    %v331 = vmul.f32 %v320, %v329
    %333 = vrot.lane.b32.xlu0 %v331, 32
    %v334 = vpop.permute.xlu0 %333
    %v336 = vadd.f32 %v326, %v334
    %v337 = vtanh.pop %v336
    %339 = vrot.lane.b32.xlu0 %v337, 64
    %v340 = vpop.permute.xlu0 %339
    %v342 = vmul.f32 %v320, %v340
    %v344 = vrot.slane %v342, 2
    %345 = vrot.lane.b32.xlu0 %v344, 32
    %v346 = vpop.permute.xlu0 %345
    %v347 = vsel %vm136, %v346, 0
    %349 = vmatprep.subr.mxu0 0.0
    %350 = vmatpush1.msra.mxu0 %v41
    %351 = vmatprep.subr.mxu0 0.0
    %352 = vmatpush1.msra.mxu0 %v42
    %353 = vmatprep.subr.mxu0 0.0
    %354 = vmatpush1.msra.mxu0 %v43
    %355 = vmatprep.subr.mxu0 0.0
    %356 = vmatpush1.msra.mxu0 %v44
    %357 = vmatprep.subr.mxu0 0.0
    %358 = vmatpush1.msra.mxu0 0.0
    %359 = vmatprep.subr.mxu0 0.0
    %360 = vmatpush1.msra.mxu0 0.0
    %361 = vmatprep.subr.mxu0 0.0
    %362 = vmatpush1.msra.mxu0 0.0
    %363 = vmatprep.subr.mxu0 0.0
    %364 = vmatpush1.msra.mxu0 0.0
    %365 = vmatprep.subr.mxu0 0.0
    %366 = vmatpush1.msra.mxu0 0.0
    %367 = vmatprep.subr.mxu0 0.0
    %368 = vmatpush1.msra.mxu0 0.0
    %369 = vmatprep.subr.mxu0 0.0
    %370 = vmatpush1.msra.mxu0 0.0
    %371 = vmatprep.subr.mxu0 0.0
    %372 = vmatpush1.msra.mxu0 0.0
    %373 = vmatprep.subr.mxu0 0.0
    %374 = vmatpush1.msra.mxu0 0.0
    %375 = vmatprep.subr.mxu0 0.0
    %376 = vmatpush1.msra.mxu0 0.0
    %377 = vmatprep.subr.mxu0 0.0
    %378 = vmatpush1.msra.mxu0 0.0
    %379 = vmatprep.subr.mxu0 0.0
    %380 = vmatpush1.msra.mxu0 0.0
    %381 = vmatprep.subr.mxu0 0.0
    %382 = vmatpush1.msra.mxu0 0.0
    %383 = vmatprep.subr.mxu0 0.0
    %384 = vmatpush1.msra.mxu0 0.0
    %385 = vmatprep.subr.mxu0 0.0
    %386 = vmatpush1.msra.mxu0 0.0
    %387 = vmatprep.subr.mxu0 0.0
    %388 = vmatpush1.msra.mxu0 0.0
    %389 = vmatprep.subr.mxu0 0.0
    %390 = vmatpush1.msra.mxu0 0.0
    %391 = vmatprep.subr.mxu0 0.0
    %392 = vmatpush1.msra.mxu0 0.0
    %393 = vmatprep.subr.mxu0 0.0
    %394 = vmatpush1.msra.mxu0 0.0
    %395 = vmatprep.subr.mxu0 0.0
    %396 = vmatpush1.msra.mxu0 0.0
    %397 = vmatprep.subr.mxu0 0.0
    %398 = vmatpush1.msra.mxu0 0.0
    %399 = vmatprep.subr.mxu0 0.0
    %400 = vmatpush1.msra.mxu0 0.0
    %401 = vmatprep.subr.mxu0 0.0
    %402 = vmatpush1.msra.mxu0 0.0
    %403 = vmatprep.subr.mxu0 0.0
    %404 = vmatpush1.msra.mxu0 0.0
    %405 = vmatprep.subr.mxu0 0.0
    %406 = vmatpush1.msra.mxu0 0.0
    %407 = vmatprep.subr.mxu0 0.0
    %408 = vmatpush1.msra.mxu0 0.0
    %409 = vmatprep.subr.mxu0 0.0
    %410 = vmatpush1.msra.mxu0 0.0
    %411 = vmatprep.subr.mxu0 0.0
    %412 = vmatpush1.msra.mxu0 0.0
    %413 = vmatprep.mubr.f32.mxu0 0.0
    %414 = vmatmul.mubr.f32.gmra.mrb[0].mxu0 %v347
    %v415 = vpop.f32.mrb[0].mxu0
    %v416 = vadd.f32 0.0, %v415
    %v417 = vpop.f32.mrb[0].mxu0
    %418 = vdwg.mxu0
    %v420 = vrot.slane %v416, 4
    %v422 = vadd.f32 %v128, %v420
    %v423 = vxor.u32 %v422, 2147483648
    %v424 = vmul.f32 %v423, 1.442695
    %v425 = vpow.pop %v424
    %v426 = vadd.f32 %v425, 1.0
    %v427 = vrcp.pop %v426
    %v428 = vmul.f32 1.0, %v427
    %v429 = vmul.f32 %v428, 2.0
    %v430 = vsub.f32 %v429, 1.0
    %v432 = vrot.slane %v336, 6
    %v434 = vmul.f32 %v428, %v432
    %436 = vrot.lane.b32.xlu0 %v430, 64
    %v437 = vpop.permute.xlu0 %436
    %v439 = vmul.f32 %v428, %v437
    %441 = vrot.lane.b32.xlu0 %v439, 32
    %v442 = vpop.permute.xlu0 %441
    %v444 = vadd.f32 %v434, %v442
    %v445 = vtanh.pop %v444
    %447 = vrot.lane.b32.xlu0 %v445, 64
    %v448 = vpop.permute.xlu0 %447
    %v450 = vmul.f32 %v428, %v448
    %v452 = vrot.slane %v450, 4
    %453 = vrot.lane.b32.xlu0 %v452, 32
    %v454 = vpop.permute.xlu0 %453
    %v455 = vsel %vm136, %v454, 0
    %457 = vmatprep.subr.mxu0 0.0
    %458 = vmatpush1.msra.mxu0 %v41
    %459 = vmatprep.subr.mxu0 0.0
    %460 = vmatpush1.msra.mxu0 %v42
    %461 = vmatprep.subr.mxu0 0.0
    %462 = vmatpush1.msra.mxu0 %v43
    %463 = vmatprep.subr.mxu0 0.0
    %464 = vmatpush1.msra.mxu0 %v44
    %465 = vmatprep.subr.mxu0 0.0
    %466 = vmatpush1.msra.mxu0 0.0
    %467 = vmatprep.subr.mxu0 0.0
    %468 = vmatpush1.msra.mxu0 0.0
    %469 = vmatprep.subr.mxu0 0.0
    %470 = vmatpush1.msra.mxu0 0.0
    %471 = vmatprep.subr.mxu0 0.0
    %472 = vmatpush1.msra.mxu0 0.0
    %473 = vmatprep.subr.mxu0 0.0
    %474 = vmatpush1.msra.mxu0 0.0
    %475 = vmatprep.subr.mxu0 0.0
    %476 = vmatpush1.msra.mxu0 0.0
    %477 = vmatprep.subr.mxu0 0.0
    %478 = vmatpush1.msra.mxu0 0.0
    %479 = vmatprep.subr.mxu0 0.0
    %480 = vmatpush1.msra.mxu0 0.0
    %481 = vmatprep.subr.mxu0 0.0
    %482 = vmatpush1.msra.mxu0 0.0
    %483 = vmatprep.subr.mxu0 0.0
    %484 = vmatpush1.msra.mxu0 0.0
    %485 = vmatprep.subr.mxu0 0.0
    %486 = vmatpush1.msra.mxu0 0.0
    %487 = vmatprep.subr.mxu0 0.0
    %488 = vmatpush1.msra.mxu0 0.0
    %489 = vmatprep.subr.mxu0 0.0
    %490 = vmatpush1.msra.mxu0 0.0
    %491 = vmatprep.subr.mxu0 0.0
    %492 = vmatpush1.msra.mxu0 0.0
    %493 = vmatprep.subr.mxu0 0.0
    %494 = vmatpush1.msra.mxu0 0.0
    %495 = vmatprep.subr.mxu0 0.0
    %496 = vmatpush1.msra.mxu0 0.0
    %497 = vmatprep.subr.mxu0 0.0
    %498 = vmatpush1.msra.mxu0 0.0
    %499 = vmatprep.subr.mxu0 0.0
    %500 = vmatpush1.msra.mxu0 0.0
    %501 = vmatprep.subr.mxu0 0.0
    %502 = vmatpush1.msra.mxu0 0.0
    %503 = vmatprep.subr.mxu0 0.0
    %504 = vmatpush1.msra.mxu0 0.0
    %505 = vmatprep.subr.mxu0 0.0
    %506 = vmatpush1.msra.mxu0 0.0
    %507 = vmatprep.subr.mxu0 0.0
    %508 = vmatpush1.msra.mxu0 0.0
    %509 = vmatprep.subr.mxu0 0.0
    %510 = vmatpush1.msra.mxu0 0.0
    %511 = vmatprep.subr.mxu0 0.0
    %512 = vmatpush1.msra.mxu0 0.0
    %513 = vmatprep.subr.mxu0 0.0
    %514 = vmatpush1.msra.mxu0 0.0
    %515 = vmatprep.subr.mxu0 0.0
    %516 = vmatpush1.msra.mxu0 0.0
    %517 = vmatprep.subr.mxu0 0.0
    %518 = vmatpush1.msra.mxu0 0.0
    %519 = vmatprep.subr.mxu0 0.0
    %520 = vmatpush1.msra.mxu0 0.0
    %521 = vmatprep.mubr.f32.mxu0 0.0
    %522 = vmatmul.mubr.f32.gmra.mrb[0].mxu0 %v455
    %v523 = vpop.f32.mrb[0].mxu0
    %v524 = vadd.f32 0.0, %v523
    %v525 = vpop.f32.mrb[0].mxu0
    %526 = vdwg.mxu0
    %v528 = vrot.slane %v524, 2
    %v530 = vadd.f32 %v128, %v528
    %v531 = vxor.u32 %v530, 2147483648
    %v532 = vmul.f32 %v531, 1.442695
    %v533 = vpow.pop %v532
    %v534 = vadd.f32 %v533, 1.0
    %v535 = vrcp.pop %v534
    %v536 = vmul.f32 1.0, %v535
    %v537 = vmul.f32 %v536, 2.0
    %v538 = vsub.f32 %v537, 1.0
    %v540 = vrot.slane %v444, 6
    %v542 = vmul.f32 %v536, %v540
    %544 = vrot.lane.b32.xlu0 %v538, 64
    %v545 = vpop.permute.xlu0 %544
    %v547 = vmul.f32 %v536, %v545
    %549 = vrot.lane.b32.xlu0 %v547, 32
    %v550 = vpop.permute.xlu0 %549
    %v552 = vadd.f32 %v542, %v550
    %v553 = vtanh.pop %v552
    %555 = vrot.lane.b32.xlu0 %v553, 64
    %v556 = vpop.permute.xlu0 %555
    %v558 = vmul.f32 %v536, %v556
    %v560 = vrot.slane %v558, 6
    %561 = vrot.lane.b32.xlu0 %v560, 32
    %v562 = vpop.permute.xlu0 %561
    %v563 = vsel %vm136, %v562, 0
    %565 = vmatprep.subr.mxu0 0.0
    %566 = vmatpush1.msra.mxu0 %v41
    %567 = vmatprep.subr.mxu0 0.0
    %568 = vmatpush1.msra.mxu0 %v42
    %569 = vmatprep.subr.mxu0 0.0
    %570 = vmatpush1.msra.mxu0 %v43
    %571 = vmatprep.subr.mxu0 0.0
    %572 = vmatpush1.msra.mxu0 %v44
    %573 = vmatprep.subr.mxu0 0.0
    %574 = vmatpush1.msra.mxu0 0.0
    %575 = vmatprep.subr.mxu0 0.0
    %576 = vmatpush1.msra.mxu0 0.0
    %577 = vmatprep.subr.mxu0 0.0
    %578 = vmatpush1.msra.mxu0 0.0
    %579 = vmatprep.subr.mxu0 0.0
    %580 = vmatpush1.msra.mxu0 0.0
    %581 = vmatprep.subr.mxu0 0.0
    %582 = vmatpush1.msra.mxu0 0.0
    %583 = vmatprep.subr.mxu0 0.0
    %584 = vmatpush1.msra.mxu0 0.0
    %585 = vmatprep.subr.mxu0 0.0
    %586 = vmatpush1.msra.mxu0 0.0
    %587 = vmatprep.subr.mxu0 0.0
    %588 = vmatpush1.msra.mxu0 0.0
    %589 = vmatprep.subr.mxu0 0.0
    %590 = vmatpush1.msra.mxu0 0.0
    %591 = vmatprep.subr.mxu0 0.0
    %592 = vmatpush1.msra.mxu0 0.0
    %593 = vmatprep.subr.mxu0 0.0
    %594 = vmatpush1.msra.mxu0 0.0
    %595 = vmatprep.subr.mxu0 0.0
    %596 = vmatpush1.msra.mxu0 0.0
    %597 = vmatprep.subr.mxu0 0.0
    %598 = vmatpush1.msra.mxu0 0.0
    %599 = vmatprep.subr.mxu0 0.0
    %600 = vmatpush1.msra.mxu0 0.0
    %601 = vmatprep.subr.mxu0 0.0
    %602 = vmatpush1.msra.mxu0 0.0
    %603 = vmatprep.subr.mxu0 0.0
    %604 = vmatpush1.msra.mxu0 0.0
    %605 = vmatprep.subr.mxu0 0.0
    %606 = vmatpush1.msra.mxu0 0.0
    %607 = vmatprep.subr.mxu0 0.0
    %608 = vmatpush1.msra.mxu0 0.0
    %609 = vmatprep.subr.mxu0 0.0
    %610 = vmatpush1.msra.mxu0 0.0
    %611 = vmatprep.subr.mxu0 0.0
    %612 = vmatpush1.msra.mxu0 0.0
    %613 = vmatprep.subr.mxu0 0.0
    %614 = vmatpush1.msra.mxu0 0.0
    %615 = vmatprep.subr.mxu0 0.0
    %616 = vmatpush1.msra.mxu0 0.0
    %617 = vmatprep.subr.mxu0 0.0
    %618 = vmatpush1.msra.mxu0 0.0
    %619 = vmatprep.subr.mxu0 0.0
    %620 = vmatpush1.msra.mxu0 0.0
    %621 = vmatprep.subr.mxu0 0.0
    %622 = vmatpush1.msra.mxu0 0.0
    %623 = vmatprep.subr.mxu0 0.0
    %624 = vmatpush1.msra.mxu0 0.0
    %625 = vmatprep.subr.mxu0 0.0
    %626 = vmatpush1.msra.mxu0 0.0
    %627 = vmatprep.subr.mxu0 0.0
    %628 = vmatpush1.msra.mxu0 0.0
    %629 = vmatprep.mubr.f32.mxu0 0.0
    %630 = vmatmul.mubr.f32.gmra.mrb[0].mxu0 %v563
    %v631 = vpop.f32.mrb[0].mxu0
    %v632 = vadd.f32 0.0, %v631
    %v633 = vpop.f32.mrb[0].mxu0
    %634 = vdwg.mxu0
    %v635 = vadd.f32 %v133, %v632
    %v636 = vxor.u32 %v635, 2147483648
    %v637 = vmul.f32 %v636, 1.442695
    %v638 = vpow.pop %v637
    %v639 = vadd.f32 %v638, 1.0
    %v640 = vrcp.pop %v639
    %v641 = vmul.f32 1.0, %v640
    %v642 = vmul.f32 %v641, 2.0
    %v643 = vsub.f32 %v642, 1.0
    %v645 = vrot.slane %v552, 6
    %v647 = vmul.f32 %v641, %v645
    %649 = vrot.lane.b32.xlu0 %v643, 64
    %v650 = vpop.permute.xlu0 %649
    %v652 = vmul.f32 %v641, %v650
    %654 = vrot.lane.b32.xlu0 %v652, 32
    %v655 = vpop.permute.xlu0 %654
    %v657 = vadd.f32 %v647, %v655
    %v658 = vtanh.pop %v657
    %660 = vrot.lane.b32.xlu0 %v658, 64
    %v661 = vpop.permute.xlu0 %660
    %v663 = vmul.f32 %v641, %v661
    %665 = vrot.lane.b32.xlu0 %v663, 32
    %v666 = vpop.permute.xlu0 %665
    %v667 = vsel %vm136, %v666, 0
    %669 = vmatprep.subr.mxu0 0.0
    %670 = vmatpush1.msra.mxu0 %v41
    %671 = vmatprep.subr.mxu0 0.0
    %672 = vmatpush1.msra.mxu0 %v42
    %673 = vmatprep.subr.mxu0 0.0
    %674 = vmatpush1.msra.mxu0 %v43
    %675 = vmatprep.subr.mxu0 0.0
    %676 = vmatpush1.msra.mxu0 %v44
    %677 = vmatprep.subr.mxu0 0.0
    %678 = vmatpush1.msra.mxu0 0.0
    %679 = vmatprep.subr.mxu0 0.0
    %680 = vmatpush1.msra.mxu0 0.0
    %681 = vmatprep.subr.mxu0 0.0
    %682 = vmatpush1.msra.mxu0 0.0
    %683 = vmatprep.subr.mxu0 0.0
    %684 = vmatpush1.msra.mxu0 0.0
    %685 = vmatprep.subr.mxu0 0.0
    %686 = vmatpush1.msra.mxu0 0.0
    %687 = vmatprep.subr.mxu0 0.0
    %688 = vmatpush1.msra.mxu0 0.0
    %689 = vmatprep.subr.mxu0 0.0
    %690 = vmatpush1.msra.mxu0 0.0
    %691 = vmatprep.subr.mxu0 0.0
    %692 = vmatpush1.msra.mxu0 0.0
    %693 = vmatprep.subr.mxu0 0.0
    %694 = vmatpush1.msra.mxu0 0.0
    %695 = vmatprep.subr.mxu0 0.0
    %696 = vmatpush1.msra.mxu0 0.0
    %697 = vmatprep.subr.mxu0 0.0
    %698 = vmatpush1.msra.mxu0 0.0
    %699 = vmatprep.subr.mxu0 0.0
    %700 = vmatpush1.msra.mxu0 0.0
    %701 = vmatprep.subr.mxu0 0.0
    %702 = vmatpush1.msra.mxu0 0.0
    %703 = vmatprep.subr.mxu0 0.0
    %704 = vmatpush1.msra.mxu0 0.0
    %705 = vmatprep.subr.mxu0 0.0
    %706 = vmatpush1.msra.mxu0 0.0
    %707 = vmatprep.subr.mxu0 0.0
    %708 = vmatpush1.msra.mxu0 0.0
    %709 = vmatprep.subr.mxu0 0.0
    %710 = vmatpush1.msra.mxu0 0.0
    %711 = vmatprep.subr.mxu0 0.0
    %712 = vmatpush1.msra.mxu0 0.0
    %713 = vmatprep.subr.mxu0 0.0
    %714 = vmatpush1.msra.mxu0 0.0
    %715 = vmatprep.subr.mxu0 0.0
    %716 = vmatpush1.msra.mxu0 0.0
    %717 = vmatprep.subr.mxu0 0.0
    %718 = vmatpush1.msra.mxu0 0.0
    %719 = vmatprep.subr.mxu0 0.0
    %720 = vmatpush1.msra.mxu0 0.0
    %721 = vmatprep.subr.mxu0 0.0
    %722 = vmatpush1.msra.mxu0 0.0
    %723 = vmatprep.subr.mxu0 0.0
    %724 = vmatpush1.msra.mxu0 0.0
    %725 = vmatprep.subr.mxu0 0.0
    %726 = vmatpush1.msra.mxu0 0.0
    %727 = vmatprep.subr.mxu0 0.0
    %728 = vmatpush1.msra.mxu0 0.0
    %729 = vmatprep.subr.mxu0 0.0
    %730 = vmatpush1.msra.mxu0 0.0
    %731 = vmatprep.subr.mxu0 0.0
    %732 = vmatpush1.msra.mxu0 0.0
    %733 = vmatprep.mubr.f32.mxu0 0.0
    %734 = vmatmul.mubr.f32.gmra.mrb[0].mxu0 %v667
    %v735 = vpop.f32.mrb[0].mxu0
    %v736 = vadd.f32 0.0, %v735
    %v737 = vpop.f32.mrb[0].mxu0
    %738 = vdwg.mxu0
    %v740 = vrot.slane %v736, 6
    %v742 = vadd.f32 %v133, %v740
    %v743 = vxor.u32 %v742, 2147483648
    %v744 = vmul.f32 %v743, 1.442695
    %v745 = vpow.pop %v744
    %v746 = vadd.f32 %v745, 1.0
    %v747 = vrcp.pop %v746
    %v748 = vmul.f32 1.0, %v747
    %v749 = vmul.f32 %v748, 2.0
    %v750 = vsub.f32 %v749, 1.0
    %v752 = vrot.slane %v657, 6
    %v754 = vmul.f32 %v748, %v752
    %756 = vrot.lane.b32.xlu0 %v750, 64
    %v757 = vpop.permute.xlu0 %756
    %v759 = vmul.f32 %v748, %v757
    %761 = vrot.lane.b32.xlu0 %v759, 32
    %v762 = vpop.permute.xlu0 %761
    %v764 = vadd.f32 %v754, %v762
    %v765 = vtanh.pop %v764
    %767 = vrot.lane.b32.xlu0 %v765, 64
    %v768 = vpop.permute.xlu0 %767
    %v770 = vmul.f32 %v748, %v768
    %v772 = vrot.slane %v770, 2
    %773 = vrot.lane.b32.xlu0 %v772, 32
    %v774 = vpop.permute.xlu0 %773
    %v775 = vsel %vm136, %v774, 0
    %777 = vmatprep.subr.mxu0 0.0
    %778 = vmatpush1.msra.mxu0 %v41
    %779 = vmatprep.subr.mxu0 0.0
    %780 = vmatpush1.msra.mxu0 %v42
    %781 = vmatprep.subr.mxu0 0.0
    %782 = vmatpush1.msra.mxu0 %v43
    %783 = vmatprep.subr.mxu0 0.0
    %784 = vmatpush1.msra.mxu0 %v44
    %785 = vmatprep.subr.mxu0 0.0
    %786 = vmatpush1.msra.mxu0 0.0
    %787 = vmatprep.subr.mxu0 0.0
    %788 = vmatpush1.msra.mxu0 0.0
    %789 = vmatprep.subr.mxu0 0.0
    %790 = vmatpush1.msra.mxu0 0.0
    %791 = vmatprep.subr.mxu0 0.0
    %792 = vmatpush1.msra.mxu0 0.0
    %793 = vmatprep.subr.mxu0 0.0
    %794 = vmatpush1.msra.mxu0 0.0
    %795 = vmatprep.subr.mxu0 0.0
    %796 = vmatpush1.msra.mxu0 0.0
    %797 = vmatprep.subr.mxu0 0.0
    %798 = vmatpush1.msra.mxu0 0.0
    %799 = vmatprep.subr.mxu0 0.0
    %800 = vmatpush1.msra.mxu0 0.0
    %801 = vmatprep.subr.mxu0 0.0
    %802 = vmatpush1.msra.mxu0 0.0
    %803 = vmatprep.subr.mxu0 0.0
    %804 = vmatpush1.msra.mxu0 0.0
    %805 = vmatprep.subr.mxu0 0.0
    %806 = vmatpush1.msra.mxu0 0.0
    %807 = vmatprep.subr.mxu0 0.0
    %808 = vmatpush1.msra.mxu0 0.0
    %809 = vmatprep.subr.mxu0 0.0
    %810 = vmatpush1.msra.mxu0 0.0
    %811 = vmatprep.subr.mxu0 0.0
    %812 = vmatpush1.msra.mxu0 0.0
    %813 = vmatprep.subr.mxu0 0.0
    %814 = vmatpush1.msra.mxu0 0.0
    %815 = vmatprep.subr.mxu0 0.0
    %816 = vmatpush1.msra.mxu0 0.0
    %817 = vmatprep.subr.mxu0 0.0
    %818 = vmatpush1.msra.mxu0 0.0
    %819 = vmatprep.subr.mxu0 0.0
    %820 = vmatpush1.msra.mxu0 0.0
    %821 = vmatprep.subr.mxu0 0.0
    %822 = vmatpush1.msra.mxu0 0.0
    %823 = vmatprep.subr.mxu0 0.0
    %824 = vmatpush1.msra.mxu0 0.0
    %825 = vmatprep.subr.mxu0 0.0
    %826 = vmatpush1.msra.mxu0 0.0
    %827 = vmatprep.subr.mxu0 0.0
    %828 = vmatpush1.msra.mxu0 0.0
    %829 = vmatprep.subr.mxu0 0.0
    %830 = vmatpush1.msra.mxu0 0.0
    %831 = vmatprep.subr.mxu0 0.0
    %832 = vmatpush1.msra.mxu0 0.0
    %833 = vmatprep.subr.mxu0 0.0
    %834 = vmatpush1.msra.mxu0 0.0
    %835 = vmatprep.subr.mxu0 0.0
    %836 = vmatpush1.msra.mxu0 0.0
    %837 = vmatprep.subr.mxu0 0.0
    %838 = vmatpush1.msra.mxu0 0.0
    %839 = vmatprep.subr.mxu0 0.0
    %840 = vmatpush1.msra.mxu0 0.0
    %841 = vmatprep.mubr.f32.mxu0 0.0
    %842 = vmatmul.mubr.f32.gmra.mrb[0].mxu0 %v775
    %v843 = vpop.f32.mrb[0].mxu0
    %v844 = vadd.f32 0.0, %v843
    %v845 = vpop.f32.mrb[0].mxu0
    %846 = vdwg.mxu0
    %v848 = vrot.slane %v844, 4
    %v850 = vadd.f32 %v133, %v848
    %v851 = vxor.u32 %v850, 2147483648
    %v852 = vmul.f32 %v851, 1.442695
    %v853 = vpow.pop %v852
    %v854 = vadd.f32 %v853, 1.0
    %v855 = vrcp.pop %v854
    %v856 = vmul.f32 1.0, %v855
    %v857 = vmul.f32 %v856, 2.0
    %v858 = vsub.f32 %v857, 1.0
    %v860 = vrot.slane %v764, 6
    %v862 = vmul.f32 %v856, %v860
    %864 = vrot.lane.b32.xlu0 %v858, 64
    %v865 = vpop.permute.xlu0 %864
    %v867 = vmul.f32 %v856, %v865
    %869 = vrot.lane.b32.xlu0 %v867, 32
    %v870 = vpop.permute.xlu0 %869
    %v872 = vadd.f32 %v862, %v870
    %v873 = vtanh.pop %v872
    %875 = vrot.lane.b32.xlu0 %v873, 64
    %v876 = vpop.permute.xlu0 %875
    %v878 = vmul.f32 %v856, %v876
    %v880 = vrot.slane %v878, 4
    %881 = vrot.lane.b32.xlu0 %v880, 32
    %v882 = vpop.permute.xlu0 %881
    %v883 = vsel %vm136, %v882, 0
    %885 = vmatprep.subr.mxu0 0.0
    %886 = vmatpush1.msra.mxu0 %v41
    %887 = vmatprep.subr.mxu0 0.0
    %888 = vmatpush1.msra.mxu0 %v42
    %889 = vmatprep.subr.mxu0 0.0
    %890 = vmatpush1.msra.mxu0 %v43
    %891 = vmatprep.subr.mxu0 0.0
    %892 = vmatpush1.msra.mxu0 %v44
    %893 = vmatprep.subr.mxu0 0.0
    %894 = vmatpush1.msra.mxu0 0.0
    %895 = vmatprep.subr.mxu0 0.0
    %896 = vmatpush1.msra.mxu0 0.0
    %897 = vmatprep.subr.mxu0 0.0
    %898 = vmatpush1.msra.mxu0 0.0
    %899 = vmatprep.subr.mxu0 0.0
    %900 = vmatpush1.msra.mxu0 0.0
    %901 = vmatprep.subr.mxu0 0.0
    %902 = vmatpush1.msra.mxu0 0.0
    %903 = vmatprep.subr.mxu0 0.0
    %904 = vmatpush1.msra.mxu0 0.0
    %905 = vmatprep.subr.mxu0 0.0
    %906 = vmatpush1.msra.mxu0 0.0
    %907 = vmatprep.subr.mxu0 0.0
    %908 = vmatpush1.msra.mxu0 0.0
    %909 = vmatprep.subr.mxu0 0.0
    %910 = vmatpush1.msra.mxu0 0.0
    %911 = vmatprep.subr.mxu0 0.0
    %912 = vmatpush1.msra.mxu0 0.0
    %913 = vmatprep.subr.mxu0 0.0
    %914 = vmatpush1.msra.mxu0 0.0
    %915 = vmatprep.subr.mxu0 0.0
    %916 = vmatpush1.msra.mxu0 0.0
    %917 = vmatprep.subr.mxu0 0.0
    %918 = vmatpush1.msra.mxu0 0.0
    %919 = vmatprep.subr.mxu0 0.0
    %920 = vmatpush1.msra.mxu0 0.0
    %921 = vmatprep.subr.mxu0 0.0
    %922 = vmatpush1.msra.mxu0 0.0
    %923 = vmatprep.subr.mxu0 0.0
    %924 = vmatpush1.msra.mxu0 0.0
    %925 = vmatprep.subr.mxu0 0.0
    %926 = vmatpush1.msra.mxu0 0.0
    %927 = vmatprep.subr.mxu0 0.0
    %928 = vmatpush1.msra.mxu0 0.0
    %929 = vmatprep.subr.mxu0 0.0
    %930 = vmatpush1.msra.mxu0 0.0
    %931 = vmatprep.subr.mxu0 0.0
    %932 = vmatpush1.msra.mxu0 0.0
    %933 = vmatprep.subr.mxu0 0.0
    %934 = vmatpush1.msra.mxu0 0.0
    %935 = vmatprep.subr.mxu0 0.0
    %936 = vmatpush1.msra.mxu0 0.0
    %937 = vmatprep.subr.mxu0 0.0
    %938 = vmatpush1.msra.mxu0 0.0
    %939 = vmatprep.subr.mxu0 0.0
    %940 = vmatpush1.msra.mxu0 0.0
    %941 = vmatprep.subr.mxu0 0.0
    %942 = vmatpush1.msra.mxu0 0.0
    %943 = vmatprep.subr.mxu0 0.0
    %944 = vmatpush1.msra.mxu0 0.0
    %945 = vmatprep.subr.mxu0 0.0
    %946 = vmatpush1.msra.mxu0 0.0
    %947 = vmatprep.subr.mxu0 0.0
    %948 = vmatpush1.msra.mxu0 0.0
    %949 = vmatprep.mubr.f32.mxu0 0.0
    %950 = vmatmul.mubr.f32.gmra.mrb[0].mxu0 %v883
    %v951 = vpop.f32.mrb[0].mxu0
    %v952 = vadd.f32 0.0, %v951
    %v953 = vpop.f32.mrb[0].mxu0
    %954 = vdwg.mxu0
    %v956 = vrot.slane %v952, 2
    %v958 = vadd.f32 %v133, %v956
    %v959 = vxor.u32 %v958, 2147483648
    %v960 = vmul.f32 %v959, 1.442695
    %v961 = vpow.pop %v960
    %v962 = vadd.f32 %v961, 1.0
    %v963 = vrcp.pop %v962
    %v964 = vmul.f32 1.0, %v963
    %v965 = vmul.f32 %v964, 2.0
    %v966 = vsub.f32 %v965, 1.0
    %v968 = vrot.slane %v872, 6
    %v970 = vmul.f32 %v964, %v968
    %972 = vrot.lane.b32.xlu0 %v966, 64
    %v973 = vpop.permute.xlu0 %972
    %v975 = vmul.f32 %v964, %v973
    %977 = vrot.lane.b32.xlu0 %v975, 32
    %v978 = vpop.permute.xlu0 %977
    %v980 = vadd.f32 %v970, %v978
    %v981 = vtanh.pop %v980
    %983 = vrot.lane.b32.xlu0 %v981, 64
    %v984 = vpop.permute.xlu0 %983
    %v986 = vmul.f32 %v964, %v984
    %vm987 = vcmask 1041408
    %v988 = vsel %vm987, %v235, %v342
    %vm989 = vcmask 1043456
    %v990 = vsel %vm989, %v988, %v450
    %vm991 = vcmask 1045504
    %v992 = vsel %vm991, %v990, %v558
    %v993 = vsel %vm987, %v663, %v770
    %v994 = vsel %vm989, %v993, %v878
    %v995 = vsel %vm991, %v994, %v986
    %v996 = vmax.f32 %v992, 0.0
    %v997 = vmax.f32 %v995, 0.0
    %v998 = vlaneseq
    %v999 = vshrl.u32 %v998, 7
    %v1000 = vsub.s32 0, %v999
    %v1001 = vrot.slane %v46, %v1000
    %1003 = vrot.lane.b32.xlu0 %v1001, 96
    %v1004 = vpop.permute.xlu0 %1003
    %v1006 = vmul.f32 %v996, %v1004
    %v1007 = vmul.f32 %v997, %v1004
    %1010 = vrot.lane.b32.xlu0 %v1006, 32
    %v1011 = vpop.permute.xlu0 %1010
    %1012 = vrot.lane.b32.xlu0 %v1007, 32
    %v1013 = vpop.permute.xlu0 %1012
    %v1016 = vsel %vm136, %v1011, 0.0
    %1017 = vadd.xlane.f32.xlu0 %v1016
    %v1018 = vpop.xlane.xlu0 %1017
    %v1019 = vsel %vm136, %v1013, 0.0
    %1020 = vadd.xlane.f32.xlu0 %v1019
    %v1021 = vpop.xlane.xlu0 %1020
    %v1022 = vlaneseq
    %v1023 = vshrl.u32 %v1022, 7
    %v1024 = vsub.s32 0, %v1023
    %v1025 = vrot.slane %v47, %v1024
    %v1026 = vadd.f32 %v1018, %v1025
    %v1027 = vadd.f32 %v1021, %v1025
    %vm1028 = vcmask 7168
    %1029 = vst.msk [vmem:[%s2] sm:$0xff] %vm1028, %v1026
    %1030 = vst.msk [vmem:[%s2 + $0x8] sm:$0xff] %vm1028, %v1027
    // Predicated region
    $region18: #{tpu_custom_call.1} parent=1 // pred_check
      _
    $region19: #{tpu_custom_call.1} parent=1 // pred_check_branch
      %1032 = sbr.rel (0) target = $region21
    $region20: #{tpu_custom_call.1} parent=1 // pred_region
      _
    $region21: #{tpu_custom_call.1} parent=1 // pred_fallthru
      _
    // Predicated region
    $region22: #{tpu_custom_call.1} parent=1 // pred_check
      _
    $region23: #{tpu_custom_call.1} parent=1 // pred_check_branch
      %1034 = sbr.rel (0) target = $region25
    $region24: #{tpu_custom_call.1} parent=1 // pred_region
      _
    $region25: #{tpu_custom_call.1} parent=1 // pred_fallthru
      _
    %1035 = vsyncpa [#allocation3], 1
    %1036 = vsyncpa [#allocation5], 1

</llo_original>
